<compile_context>
chip_gen: v5e
topology: v5e:2x2
jax: 0.10.0
libtpu: 0.0.40
codegen_flags: <defaults>
</compile_context>

<pallas_src>
import functools

import jax
import jax.numpy as jnp
from jax.experimental import pallas as pl
from jax.experimental.pallas import tpu as pltpu

LANES = 128


# ----------------------------- fused kernel --------------------------------

def _mcn_fused_kernel(text_ref, video_ref, audio_ref, slab_ref,
                      feat_ref, loss_ref, *, dt):
    """Whole MCN forward in one invocation.

    slab_ref layout (all rows are 128 lanes wide, f32):
      [0        : dt      ]  W_tp   Sentence_Maxpool fc   (Dt x D   in cols 0:D)
      [dt       : dt+128  ]  W_fc1  block-diag GEU fc     (text|video|audio)
      [dt+128   : dt+256  ]  W_cg   block-diag GEU context gate
      [dt+256   : dt+384  ]  W_r1   block-diag recon layer 1
      [dt+384   : dt+512  ]  W_r2   block-diag recon layer 2
      [dt+512   : dt+520  ]  misc rows: b_tp, b_fc1, b_cg, b_r1, b_r2, w_mse, 0, 0
    Lane placement: text 0:D, video D:D+Dv, audio D+Dv:D+Dv+Da (pre-GEU feats /
    recon targets); GEU outputs at text 0:D, video D:2D, audio 2D:3D.
    """
    f32 = jnp.float32
    B, S, Dt = text_ref.shape

    r = dt
    W_tp = slab_ref[0:dt, :]
    W_fc1 = slab_ref[r:r + 128, :]
    W_cg = slab_ref[r + 128:r + 256, :]
    W_r1 = slab_ref[r + 256:r + 384, :]
    W_r2 = slab_ref[r + 384:r + 512, :]
    misc = slab_ref[r + 512:r + 520, :]          # (8, 128) bias / mse-weight block
    b_tp = misc[0:1, :]
    b_fc1 = misc[1:2, :]
    b_cg = misc[2:3, :]
    b_r1 = misc[3:4, :]
    b_r2 = misc[4:5, :]
    w_mse = misc[5:6, :]

    # ---- feature_extractor_method == 'mean' (inputs pre-placed in their lanes)
    video_gt = jnp.mean(video_ref[...], axis=1)              # (B, 128)
    audio_gt = jnp.mean(audio_ref[...], axis=1)              # (B, 128)

    # ---- Sentence_Maxpool: one flat matmul, relu, max over sequence ---------
    text = text_ref[...].reshape(B * S, Dt)                   # (B*S, Dt)
    h = jnp.dot(text, W_tp, preferred_element_type=f32) + b_tp   # (B*S, 128)
    text_gt = jnp.max(jnp.maximum(h, 0.0).reshape(B, S, LANES), axis=1)  # (B,128)

    # packed pre-GEU features / recon targets: text | video | audio | 0
    x = text_gt + video_gt + audio_gt                          # (B, 128)

    # ---- 3x Gated_Embedding_Unit as two block-diagonal matmuls + gating -----
    h1 = jnp.dot(x, W_fc1, preferred_element_type=f32) + b_fc1
    g = jnp.dot(h1, W_cg, preferred_element_type=f32) + b_cg
    out = h1 * jax.nn.sigmoid(g)                               # (B,128) t|v|a|0

    # ---- 3x recon MLP (Linear-ReLU-Linear-ReLU) as two block-diag matmuls ---
    hr = jnp.maximum(jnp.dot(out, W_r1, preferred_element_type=f32) + b_r1, 0.0)
    rec = jnp.maximum(jnp.dot(hr, W_r2, preferred_element_type=f32) + b_r2, 0.0)

    # ---- per-modality MSE folded into one lane-weighted reduce ---------------
    d = rec - x
    per_row = jnp.sum(d * d * w_mse, axis=-1, keepdims=True)   # (B,1) = t+v+a MSE

    feat_ref[...] = out                                        # single lane-dense store
    loss_ref[0, 0] = jnp.mean(per_row)                         # scalar -> SMEM


# ----------------------------- host-side packing ----------------------------

def _place(blocks, rows):
    """Place (array, row_off, col_off) blocks into a zero (rows, 128) slab."""
    m = jnp.zeros((rows, LANES), jnp.float32)
    for w, r0, c0 in blocks:
        w = jnp.asarray(w, jnp.float32)
        m = m.at[r0:r0 + w.shape[0], c0:c0 + w.shape[1]].set(w)
    return m


def pack_params(p):
    wtp, btp = p["text_pool"]
    wt1, bt1, wt2, bt2 = p["gu_text"]
    wv1, bv1, wv2, bv2 = p["gu_video"]
    wa1, ba1, wa2, ba2 = p["gu_audio"]
    rv1, rvb1, rv2, rvb2 = p["recon_v"]
    ra1, rab1, ra2, rab2 = p["recon_a"]
    rt1, rtb1, rt2, rtb2 = p["recon_t"]

    Dt, D = wtp.shape
    Dv = wv1.shape[0]
    Da = wa1.shape[0]
    R = rt1.shape[1]
    assert Dt % 8 == 0
    assert D + Dv + Da <= LANES and 3 * D <= LANES and 3 * R <= LANES

    ov, oa = D, D + Dv        # lane offsets of video / audio pre-GEU features

    W_tp = _place([(wtp, 0, 0)], Dt)
    W_fc1 = _place([(wt1, 0, 0), (wv1, ov, D), (wa1, oa, 2 * D)], LANES)
    W_cg = _place([(wt2, 0, 0), (wv2, D, D), (wa2, 2 * D, 2 * D)], LANES)
    W_r1 = _place([(rt1, 0, 0), (rv1, D, R), (ra1, 2 * D, 2 * R)], LANES)
    W_r2 = _place([(rt2, 0, 0), (rv2, R, ov), (ra2, 2 * R, oa)], LANES)

    def vec(pieces):
        return _place([(jnp.asarray(b, jnp.float32).reshape(1, -1), 0, c)
                       for b, c in pieces], 1)

    misc = jnp.concatenate([
        vec([(btp, 0)]),
        vec([(bt1, 0), (bv1, D), (ba1, 2 * D)]),
        vec([(bt2, 0), (bv2, D), (ba2, 2 * D)]),
        vec([(rtb1, 0), (rvb1, R), (rab1, 2 * R)]),
        vec([(rtb2, 0), (rvb2, ov), (rab2, oa)]),
        vec([(jnp.full((1, D), 1.0 / D), 0),
             (jnp.full((1, Dv), 1.0 / Dv), ov),
             (jnp.full((1, Da), 1.0 / Da), oa)]),
        jnp.zeros((2, LANES), jnp.float32),
    ], axis=0)                                                  # (8, 128)

    slab = jnp.concatenate([W_tp, W_fc1, W_cg, W_r1, W_r2, misc], axis=0)
    return slab, (Dt, D, Dv, Da)


# ----------------------------- wrapper --------------------------------------

def mcn_forward(text_emb, video, audio, p):
    """Fused MCN forward. Returns (text, video, audio, loss_recon)."""
    slab, (Dt, D, Dv, Da) = pack_params(p)
    B = text_emb.shape[0]
    ov, oa = D, D + Dv

    # Lane-place video/audio on the host (layout plumbing, not compute): the
    # in-kernel mean then lands directly in the packed feature lanes.
    video_p = jnp.pad(jnp.asarray(video, jnp.float32),
                      ((0, 0), (0, 0), (ov, LANES - ov - Dv)))
    audio_p = jnp.pad(jnp.asarray(audio, jnp.float32),
                      ((0, 0), (0, 0), (oa, LANES - oa - Da)))

    vmem = pl.BlockSpec(memory_space=pltpu.MemorySpace.VMEM)
    smem = pl.BlockSpec(memory_space=pltpu.MemorySpace.SMEM)

    feat, loss = pl.pallas_call(
        functools.partial(_mcn_fused_kernel, dt=Dt),
        in_specs=[vmem, vmem, vmem, vmem],
        out_specs=(vmem, smem),
        out_shape=(
            jax.ShapeDtypeStruct((B, LANES), jnp.float32),
            jax.ShapeDtypeStruct((1, 1), jnp.float32),
        ),
    )(jnp.asarray(text_emb, jnp.float32), video_p, audio_p, slab)

    text_out = feat[:, 0:D]
    video_out = feat[:, D:2 * D]
    audio_out = feat[:, 2 * D:3 * D]
    return text_out, video_out, audio_out, loss[0, 0]


# ----------------------------- pure-JAX reference ----------------------------

def ref_forward(text_emb, video, audio, p):
    def lin(x, w, b):
        return x @ w + b

    def geu(x, w1, b1, w2, b2):
        h = lin(x, w1, b1)
        return h * jax.nn.sigmoid(lin(h, w2, b2))

    def recon(x, w1, b1, w2, b2):
        h = jax.nn.relu(lin(x, w1, b1))
        return jax.nn.relu(lin(h, w2, b2))

    video_gt = video.mean(axis=1)
    audio_gt = audio.mean(axis=1)
    text_gt = jnp.max(jax.nn.relu(text_emb @ p["text_pool"][0] + p["text_pool"][1]), axis=1)
    text_out = geu(text_gt, *p["gu_text"])
    video_out = geu(video_gt, *p["gu_video"])
    audio_out = geu(audio_gt, *p["gu_audio"])
    mse_v = jnp.mean((recon(video_out, *p["recon_v"]) - video_gt) ** 2, axis=-1)
    mse_a = jnp.mean((recon(audio_out, *p["recon_a"]) - audio_gt) ** 2, axis=-1)
    mse_t = jnp.mean((recon(text_out, *p["recon_t"]) - text_gt) ** 2, axis=-1)
    loss = jnp.mean(mse_v + mse_a + mse_t)
    return text_out, video_out, audio_out, loss


# ----------------------------- params ----------------------------------------

def init_linear(key, din, dout):
    kw, kb = jax.random.split(key)
    w = jax.random.normal(kw, (din, dout), jnp.float32) / jnp.sqrt(din)
    b = 0.01 * jax.random.normal(kb, (1, dout), jnp.float32)
    return w, b


def init_geu(key, din, dout):
    k1, k2 = jax.random.split(key)
    w1, b1 = init_linear(k1, din, dout)
    w2, b2 = init_linear(k2, dout, dout)
    return w1, b1, w2, b2


def init_mlp(key, din, dhid, dout):
    k1, k2 = jax.random.split(key)
    w1, b1 = init_linear(k1, din, dhid)
    w2, b2 = init_linear(k2, dhid, dout)
    return w1, b1, w2, b2


# ----------------------------- main -------------------------------------------

if __name__ == "__main__":
    B, S = 2, 8
    Dt = 32            # text_feat_dim (BERT embedding dim)
    D = 32             # embd_dim
    Dv, Da = 24, 40    # video_feat_dim, audio_feat_dim
    R = 16             # recon_size
    Tv, Ta = 6, 10     # time steps for video / audio

    key = jax.random.PRNGKey(0)
    ks = jax.random.split(key, 10)

    text_emb = jax.random.normal(ks[0], (B, S, Dt), jnp.float32)
    video = jax.random.normal(ks[1], (B, Tv, Dv), jnp.float32)
    audio = jax.random.normal(ks[2], (B, Ta, Da), jnp.float32)

    params = {
        "text_pool": init_linear(ks[3], Dt, D),
        "gu_text":   init_geu(ks[4], D, D),
        "gu_video":  init_geu(ks[5], Dv, D),
        "gu_audio":  init_geu(ks[6], Da, D),
        "recon_v":   init_mlp(ks[7], D, R, Dv),
        "recon_a":   init_mlp(ks[8], D, R, Da),
        "recon_t":   init_mlp(ks[9], D, R, D),
    }

    out = mcn_forward(text_emb, video, audio, params)
    out = jax.block_until_ready(out)

    ref = ref_forward(text_emb, video, audio, params)
    for got, want in zip(out, ref):
        assert jnp.allclose(got, want, atol=1e-4, rtol=1e-4), (got, want)

    print("KERNEL_OK")
</pallas_src>

<mosaic_0001>
module attributes {stable_mosaic.version = 11 : i64} {
  func.func @_mcn_fused_kernel(%arg0: memref<2x8x32xf32, #tpu.memory_space<vmem>>, %arg1: memref<2x6x128xf32, #tpu.memory_space<vmem>>, %arg2: memref<2x10x128xf32, #tpu.memory_space<vmem>>, %arg3: memref<552x128xf32, #tpu.memory_space<vmem>>, %arg4: memref<2x128xf32, #tpu.memory_space<vmem>>, %arg5: memref<1x1xf32, #tpu.memory_space<smem>>) attributes {dimension_semantics = [], scalar_prefetch = 0 : i64, scratch_operands = 0 : i64, tpu.core_type = #tpu.core_type<tc>} {
    %c0 = arith.constant 0 : index
    %c0_0 = arith.constant 0 : index
    %0 = vector.load %arg3[%c0, %c0_0] : memref<552x128xf32, #tpu.memory_space<vmem>>, vector<32x128xf32>
    %c32 = arith.constant 32 : index
    %c0_1 = arith.constant 0 : index
    %1 = vector.load %arg3[%c32, %c0_1] : memref<552x128xf32, #tpu.memory_space<vmem>>, vector<128x128xf32>
    %c160 = arith.constant 160 : index
    %c0_2 = arith.constant 0 : index
    %2 = vector.load %arg3[%c160, %c0_2] : memref<552x128xf32, #tpu.memory_space<vmem>>, vector<128x128xf32>
    %c288 = arith.constant 288 : index
    %c0_3 = arith.constant 0 : index
    %3 = vector.load %arg3[%c288, %c0_3] : memref<552x128xf32, #tpu.memory_space<vmem>>, vector<128x128xf32>
    %c416 = arith.constant 416 : index
    %c0_4 = arith.constant 0 : index
    %4 = vector.load %arg3[%c416, %c0_4] : memref<552x128xf32, #tpu.memory_space<vmem>>, vector<128x128xf32>
    %c544 = arith.constant 544 : index
    %c0_5 = arith.constant 0 : index
    %5 = vector.load %arg3[%c544, %c0_5] : memref<552x128xf32, #tpu.memory_space<vmem>>, vector<8x128xf32>
    %6 = vector.extract_strided_slice %5 {offsets = [0, 0], sizes = [1, 128], strides = [1, 1]} : vector<8x128xf32> to vector<1x128xf32>
    %7 = vector.extract_strided_slice %5 {offsets = [1, 0], sizes = [1, 128], strides = [1, 1]} : vector<8x128xf32> to vector<1x128xf32>
    %8 = vector.extract_strided_slice %5 {offsets = [2, 0], sizes = [1, 128], strides = [1, 1]} : vector<8x128xf32> to vector<1x128xf32>
    %9 = vector.extract_strided_slice %5 {offsets = [3, 0], sizes = [1, 128], strides = [1, 1]} : vector<8x128xf32> to vector<1x128xf32>
    %10 = vector.extract_strided_slice %5 {offsets = [4, 0], sizes = [1, 128], strides = [1, 1]} : vector<8x128xf32> to vector<1x128xf32>
    %11 = vector.extract_strided_slice %5 {offsets = [5, 0], sizes = [1, 128], strides = [1, 1]} : vector<8x128xf32> to vector<1x128xf32>
    %c0_6 = arith.constant 0 : index
    %c0_7 = arith.constant 0 : index
    %c0_8 = arith.constant 0 : index
    %12 = vector.load %arg1[%c0_6, %c0_7, %c0_8] : memref<2x6x128xf32, #tpu.memory_space<vmem>>, vector<2x6x128xf32>
    %cst = arith.constant dense<0.000000e+00> : vector<2x128xf32>
    %13 = vector.multi_reduction <add>, %12, %cst [1] : vector<2x6x128xf32> to vector<2x128xf32>
    %cst_9 = arith.constant 6.000000e+00 : f32
    %14 = vector.broadcast %cst_9 : f32 to vector<2x128xf32>
    %15 = arith.divf %13, %14 : vector<2x128xf32>
    %c0_10 = arith.constant 0 : index
    %c0_11 = arith.constant 0 : index
    %c0_12 = arith.constant 0 : index
    %16 = vector.load %arg2[%c0_10, %c0_11, %c0_12] : memref<2x10x128xf32, #tpu.memory_space<vmem>>, vector<2x10x128xf32>
    %cst_13 = arith.constant dense<0.000000e+00> : vector<2x128xf32>
    %17 = vector.multi_reduction <add>, %16, %cst_13 [1] : vector<2x10x128xf32> to vector<2x128xf32>
    %cst_14 = arith.constant 1.000000e+01 : f32
    %18 = vector.broadcast %cst_14 : f32 to vector<2x128xf32>
    %19 = arith.divf %17, %18 : vector<2x128xf32>
    %c0_15 = arith.constant 0 : index
    %c0_16 = arith.constant 0 : index
    %c0_17 = arith.constant 0 : index
    %20 = vector.load %arg0[%c0_15, %c0_16, %c0_17] : memref<2x8x32xf32, #tpu.memory_space<vmem>>, vector<2x8x32xf32>
    %21 = vector.shape_cast %20 : vector<2x8x32xf32> to vector<16x32xf32>
    %cst_18 = arith.constant dense<0.000000e+00> : vector<16x128xf32>
    %22 = tpu.matmul %21, %0, %cst_18 {dimension_numbers = #tpu.dot_dimension_numbers<[1], [0], [0], [1], [0, 0, 1, 1], [], []>} : vector<16x32xf32>, vector<32x128xf32>, vector<16x128xf32> -> vector<16x128xf32>
    %23 = vector.broadcast %6 : vector<1x128xf32> to vector<16x128xf32>
    %24 = arith.addf %22, %23 : vector<16x128xf32>
    %cst_19 = arith.constant 0.000000e+00 : f32
    %25 = vector.broadcast %cst_19 : f32 to vector<16x128xf32>
    %26 = arith.maximumf %24, %25 : vector<16x128xf32>
    %27 = vector.shape_cast %26 : vector<16x128xf32> to vector<2x8x128xf32>
    %cst_20 = arith.constant dense<0xFF800000> : vector<2x128xf32>
    %28 = vector.multi_reduction <maximumf>, %27, %cst_20 [1] : vector<2x8x128xf32> to vector<2x128xf32>
    %29 = arith.addf %28, %15 : vector<2x128xf32>
    %30 = arith.addf %29, %19 : vector<2x128xf32>
    %cst_21 = arith.constant dense<0.000000e+00> : vector<2x128xf32>
    %31 = tpu.matmul %30, %1, %cst_21 {dimension_numbers = #tpu.dot_dimension_numbers<[1], [0], [0], [1], [0, 0, 1, 1], [], []>} : vector<2x128xf32>, vector<128x128xf32>, vector<2x128xf32> -> vector<2x128xf32>
    %32 = vector.broadcast %7 : vector<1x128xf32> to vector<2x128xf32>
    %33 = arith.addf %31, %32 : vector<2x128xf32>
    %cst_22 = arith.constant dense<0.000000e+00> : vector<2x128xf32>
    %34 = tpu.matmul %33, %2, %cst_22 {dimension_numbers = #tpu.dot_dimension_numbers<[1], [0], [0], [1], [0, 0, 1, 1], [], []>} : vector<2x128xf32>, vector<128x128xf32>, vector<2x128xf32> -> vector<2x128xf32>
    %35 = vector.broadcast %8 : vector<1x128xf32> to vector<2x128xf32>
    %36 = arith.addf %34, %35 : vector<2x128xf32>
    %37 = arith.negf %36 : vector<2x128xf32>
    %38 = math.exp %37 : vector<2x128xf32>
    %cst_23 = arith.constant 1.000000e+00 : f32
    %39 = vector.broadcast %cst_23 : f32 to vector<2x128xf32>
    %40 = arith.addf %39, %38 : vector<2x128xf32>
    %41 = arith.divf %39, %40 : vector<2x128xf32>
    %42 = arith.mulf %33, %41 : vector<2x128xf32>
    %cst_24 = arith.constant dense<0.000000e+00> : vector<2x128xf32>
    %43 = tpu.matmul %42, %3, %cst_24 {dimension_numbers = #tpu.dot_dimension_numbers<[1], [0], [0], [1], [0, 0, 1, 1], [], []>} : vector<2x128xf32>, vector<128x128xf32>, vector<2x128xf32> -> vector<2x128xf32>
    %44 = vector.broadcast %9 : vector<1x128xf32> to vector<2x128xf32>
    %45 = arith.addf %43, %44 : vector<2x128xf32>
    %cst_25 = arith.constant 0.000000e+00 : f32
    %46 = vector.broadcast %cst_25 : f32 to vector<2x128xf32>
    %47 = arith.maximumf %45, %46 : vector<2x128xf32>
    %cst_26 = arith.constant dense<0.000000e+00> : vector<2x128xf32>
    %48 = tpu.matmul %47, %4, %cst_26 {dimension_numbers = #tpu.dot_dimension_numbers<[1], [0], [0], [1], [0, 0, 1, 1], [], []>} : vector<2x128xf32>, vector<128x128xf32>, vector<2x128xf32> -> vector<2x128xf32>
    %49 = vector.broadcast %10 : vector<1x128xf32> to vector<2x128xf32>
    %50 = arith.addf %48, %49 : vector<2x128xf32>
    %cst_27 = arith.constant 0.000000e+00 : f32
    %51 = vector.broadcast %cst_27 : f32 to vector<2x128xf32>
    %52 = arith.maximumf %50, %51 : vector<2x128xf32>
    %53 = arith.subf %52, %30 : vector<2x128xf32>
    %54 = arith.mulf %53, %53 : vector<2x128xf32>
    %55 = vector.broadcast %11 : vector<1x128xf32> to vector<2x128xf32>
    %56 = arith.mulf %54, %55 : vector<2x128xf32>
    %cst_28 = arith.constant dense<0.000000e+00> : vector<2xf32>
    %57 = vector.multi_reduction <add>, %56, %cst_28 [1] : vector<2x128xf32> to vector<2xf32>
    %58 = vector.shape_cast %57 : vector<2xf32> to vector<2x1xf32>
    %c0_29 = arith.constant 0 : index
    %c0_30 = arith.constant 0 : index
    %59 = vector.load %arg4[%c0_29, %c0_30] : memref<2x128xf32, #tpu.memory_space<vmem>>, vector<2x128xf32>
    tpu.vector_store %arg4[%c0_29, %c0_30], %42 {strides = array<i32>} : memref<2x128xf32, #tpu.memory_space<vmem>>, vector<2x128xf32>,
    %60 = vector.shape_cast %58 : vector<2x1xf32> to vector<1x2x1xf32>
    %cst_31 = arith.constant dense<0.000000e+00> : vector<1xf32>
    %61 = vector.multi_reduction <add>, %60, %cst_31 [1, 2] : vector<1x2x1xf32> to vector<1xf32>
    %62 = vector.shape_cast %61 : vector<1xf32> to vector<1x1x1xf32>
    %63 = vector.extract %62[0, 0, 0] : f32 from vector<1x1x1xf32>
    %cst_32 = arith.constant 2.000000e+00 : f32
    %64 = arith.divf %63, %cst_32 : f32
    %c0_33 = arith.constant 0 : index
    %c0_34 = arith.constant 0 : index
    %65 = memref.load %arg5[%c0_33, %c0_34] : memref<1x1xf32, #tpu.memory_space<smem>>
    memref.store %64, %arg5[%c0_33, %c0_34] : memref<1x1xf32, #tpu.memory_space<smem>>
    return
  }
}

</mosaic_0001>

<llo_original>
// kernel: tpu_custom_call.1
$region0: #{tpu_custom_call.1}
  #allocation0 [shape = 'u32[]', space=smem, size = 0x4, offset = 0x4, fixed_abs, tag = 'smem constant byte address 0x4 - core index']
  #allocation1 [shape = 'u32[72,128]{1,0:T(1,128)}', space=vmem, size = 0x9000, scoped, tag = 'internal scratch']
  %s0 = inlined_call_operand.vmem [shape: f32[2,8,32], index: 0, kind: input, shape index: {}]
  %s1 = inlined_call_operand.vmem [shape: f32[2,6,128], index: 1, kind: input, shape index: {}]
  %s2 = inlined_call_operand.vmem [shape: f32[2,10,128], index: 2, kind: input, shape index: {}]
  %s3 = inlined_call_operand.hbm [shape: f32[552,128], index: 3, kind: input, shape index: {}]
  %s4 = inlined_call_operand.hbm [shape: f32[2,128], index: 4, kind: output, shape index: {0}]
  %s5 = inlined_call_operand.hbm [shape: f32[1,1], index: 5, kind: output, shape index: {1}]
  %6 = xla_tuple %s4, %s5
  %s7 = sld [smem:[#allocation0]]
  $region38: #{tpu_custom_call.1} parent=0
    _
  %s9 = ssub.s32 1, %s7
  %s10 = scalar_select 0, %s9, %s7
  $region1: #{tpu_custom_call.1} parent=0
    #allocation2 [shape = 'u8[282624]{0}', space=vmem, size = 0x45000, scoped, tag = 'input window, operand 3, single buffered']
    #allocation3 [shape = 's32[1]{0}', space=sflag, size = 0x4, scoped, tag = 'scoped memory for tpu_custom_call.1']
    #allocation4 [shape = 's32[1]{0}', space=sflag, size = 0x4, scoped, tag = 'scoped memory for tpu_custom_call.1']
    #allocation5 [shape = 's32[1]{0}', space=sflag, size = 0x4, scoped, tag = 'scoped memory for tpu_custom_call.1']
    #allocation6 [shape = 'u8[1024]{0}', space=vmem, size = 0x400, scoped, tag = 'output window, operand 0, single buffered']
    #allocation7 [shape = 'u8[512]{0}', space=smem, size = 0x200, scoped, tag = 'output window, operand 1, single buffered']
    %11 = vsyncpa [#allocation3], 0
    %12 = vsyncpa [#allocation4], 0
    %13 = vsyncpa [#allocation5], 0
    // Predicated region
    $region2: #{tpu_custom_call.1} parent=1 // pred_check
      _
    $region3: #{tpu_custom_call.1} parent=1 // pred_check_branch
      %15 = sbr.rel (0) target = $region5
    $region4: #{tpu_custom_call.1} parent=1 // pred_region
      _
    $region5: #{tpu_custom_call.1} parent=1 // pred_fallthru
      _
    // Predicated region
    $region6: #{tpu_custom_call.1} parent=1 // pred_check
      _
    $region7: #{tpu_custom_call.1} parent=1 // pred_check_branch
      %17 = sbr.rel (0) target = $region9
    $region8: #{tpu_custom_call.1} parent=1 // pred_region
      _
    $region9: #{tpu_custom_call.1} parent=1 // pred_fallthru
      _
    // Predicated region
    $region10: #{tpu_custom_call.1} parent=1 // pred_check
      _
    $region11: #{tpu_custom_call.1} parent=1 // pred_check_branch
      %19 = sbr.rel (0) target = $region13
    $region12: #{tpu_custom_call.1} parent=1 // pred_region
      _
    $region13: #{tpu_custom_call.1} parent=1 // pred_fallthru
      _
    // Predicated region
    $region14: #{tpu_custom_call.1} parent=1 // pred_check
      _
    $region15: #{tpu_custom_call.1} parent=1 // pred_check_branch
      %21 = sbr.rel (0) target = $region17
    $region16: #{tpu_custom_call.1} parent=1 // pred_region
      %23 = vsyncadd [#allocation3], 0
      %s24 = sshll.u32 %s3, 4
      %s25 = int_to_ptr.hbm [resolvable:$true] %s24
      %s26 = sshll.u32 [#allocation2], 4
      %s27 = int_to_ptr.vmem [resolvable:$true] %s26
      %32 = dma.hbm_to_vmem [thread:$0]  %s25, 8832, %s27, [#allocation3], 128, 128, 8
    $region17: #{tpu_custom_call.1} parent=1 // pred_fallthru
      _
    // Predicated region
    $region18: #{tpu_custom_call.1} parent=1 // pred_check
      _
    $region19: #{tpu_custom_call.1} parent=1 // pred_check_branch
      %34 = sbr.rel (0) target = $region21
    $region20: #{tpu_custom_call.1} parent=1 // pred_region
      %36 = dma.done [#allocation3], 8832
    $region21: #{tpu_custom_call.1} parent=1 // pred_fallthru
      _
    %v37 = vld [vmem:[#allocation2] sm:$0xff]
    %v38 = vld [vmem:[#allocation2 + $0x8] sm:$0xff]
    %v39 = vld [vmem:[#allocation2 + $0x10] sm:$0xff]
    %v40 = vld [vmem:[#allocation2 + $0x18] sm:$0xff]
    %v41 = vld [vmem:[#allocation2 + $0x20] sm:$0xff]
    %v42 = vld [vmem:[#allocation2 + $0x28] sm:$0xff]
    %v43 = vld [vmem:[#allocation2 + $0x30] sm:$0xff]
    %v44 = vld [vmem:[#allocation2 + $0x38] sm:$0xff]
    %v45 = vld [vmem:[#allocation2 + $0x40] sm:$0xff]
    %v46 = vld [vmem:[#allocation2 + $0x48] sm:$0xff]
    %v47 = vld [vmem:[#allocation2 + $0x50] sm:$0xff]
    %v48 = vld [vmem:[#allocation2 + $0x58] sm:$0xff]
    %v49 = vld [vmem:[#allocation2 + $0x60] sm:$0xff]
    %v50 = vld [vmem:[#allocation2 + $0x68] sm:$0xff]
    %v51 = vld [vmem:[#allocation2 + $0x70] sm:$0xff]
    %v52 = vld [vmem:[#allocation2 + $0x78] sm:$0xff]
    %v53 = vld [vmem:[#allocation2 + $0x80] sm:$0xff]
    %v54 = vld [vmem:[#allocation2 + $0x88] sm:$0xff]
    %v55 = vld [vmem:[#allocation2 + $0x90] sm:$0xff]
    %v56 = vld [vmem:[#allocation2 + $0x98] sm:$0xff]
    %v57 = vld [vmem:[#allocation2 + $0xa0] sm:$0xff]
    %v58 = vld [vmem:[#allocation2 + $0xa8] sm:$0xff]
    %v59 = vld [vmem:[#allocation2 + $0xb0] sm:$0xff]
    %v60 = vld [vmem:[#allocation2 + $0xb8] sm:$0xff]
    %v61 = vld [vmem:[#allocation2 + $0xc0] sm:$0xff]
    %v62 = vld [vmem:[#allocation2 + $0xc8] sm:$0xff]
    %v63 = vld [vmem:[#allocation2 + $0xd0] sm:$0xff]
    %v64 = vld [vmem:[#allocation2 + $0xd8] sm:$0xff]
    %v65 = vld [vmem:[#allocation2 + $0xe0] sm:$0xff]
    %v66 = vld [vmem:[#allocation2 + $0xe8] sm:$0xff]
    %v67 = vld [vmem:[#allocation2 + $0xf0] sm:$0xff]
    %v68 = vld [vmem:[#allocation2 + $0xf8] sm:$0xff]
    %v69 = vld [vmem:[#allocation2 + $0x100] sm:$0xff]
    %v70 = vld [vmem:[#allocation2 + $0x108] sm:$0xff]
    %v71 = vld [vmem:[#allocation2 + $0x110] sm:$0xff]
    %v72 = vld [vmem:[#allocation2 + $0x118] sm:$0xff]
    %v73 = vld [vmem:[#allocation2 + $0x120] sm:$0xff]
    %v74 = vld [vmem:[#allocation2 + $0x128] sm:$0xff]
    %v75 = vld [vmem:[#allocation2 + $0x130] sm:$0xff]
    %v76 = vld [vmem:[#allocation2 + $0x138] sm:$0xff]
    %v77 = vld [vmem:[#allocation2 + $0x140] sm:$0xff]
    %v78 = vld [vmem:[#allocation2 + $0x148] sm:$0xff]
    %v79 = vld [vmem:[#allocation2 + $0x150] sm:$0xff]
    %v80 = vld [vmem:[#allocation2 + $0x158] sm:$0xff]
    %v81 = vld [vmem:[#allocation2 + $0x160] sm:$0xff]
    %v82 = vld [vmem:[#allocation2 + $0x168] sm:$0xff]
    %v83 = vld [vmem:[#allocation2 + $0x170] sm:$0xff]
    %v84 = vld [vmem:[#allocation2 + $0x178] sm:$0xff]
    %v85 = vld [vmem:[#allocation2 + $0x180] sm:$0xff]
    %v86 = vld [vmem:[#allocation2 + $0x188] sm:$0xff]
    %v87 = vld [vmem:[#allocation2 + $0x190] sm:$0xff]
    %v88 = vld [vmem:[#allocation2 + $0x198] sm:$0xff]
    %v89 = vld [vmem:[#allocation2 + $0x1a0] sm:$0xff]
    %v90 = vld [vmem:[#allocation2 + $0x1a8] sm:$0xff]
    %v91 = vld [vmem:[#allocation2 + $0x1b0] sm:$0xff]
    %v92 = vld [vmem:[#allocation2 + $0x1b8] sm:$0xff]
    %v93 = vld [vmem:[#allocation2 + $0x1c0] sm:$0xff]
    %v94 = vld [vmem:[#allocation2 + $0x1c8] sm:$0xff]
    %v95 = vld [vmem:[#allocation2 + $0x1d0] sm:$0xff]
    %v96 = vld [vmem:[#allocation2 + $0x1d8] sm:$0xff]
    %v97 = vld [vmem:[#allocation2 + $0x1e0] sm:$0xff]
    %v98 = vld [vmem:[#allocation2 + $0x1e8] sm:$0xff]
    %v99 = vld [vmem:[#allocation2 + $0x1f0] sm:$0xff]
    %v100 = vld [vmem:[#allocation2 + $0x1f8] sm:$0xff]
    %v101 = vld [vmem:[#allocation2 + $0x200] sm:$0xff]
    %v102 = vld [vmem:[#allocation2 + $0x208] sm:$0xff]
    %v103 = vld [vmem:[#allocation2 + $0x210] sm:$0xff]
    %v104 = vld [vmem:[#allocation2 + $0x218] sm:$0xff]
    %v105 = vld [vmem:[#allocation2 + $0x220] sm:$0xff]
    %v106 = vld [vmem:[%s1] sm:$0x3f]
    %v107 = vld [vmem:[%s1 + $0x8] sm:$0x3f]
    %vm108 = vcmask 1045504
    %v109 = vsel %vm108, %v106, 0.0
    %v110 = vrot.slane %v109, 4
    %v111 = vadd.f32 %v109, %v110
    %v112 = vrot.slane %v111, 2
    %v113 = vadd.f32 %v111, %v112
    %v114 = vrot.slane %v113, 1
    %v115 = vadd.f32 %v113, %v114
    %v116 = vsel %vm108, %v107, 0.0
    %v117 = vrot.slane %v116, 4
    %v118 = vadd.f32 %v116, %v117
    %v119 = vrot.slane %v118, 2
    %v120 = vadd.f32 %v118, %v119
    %v121 = vrot.slane %v120, 1
    %v122 = vadd.f32 %v120, %v121
    %v123 = vrcp.pop 6.0
    %v124 = vmul.f32 6.0, %v123
    %v125 = vsub.f32 1.0, %v124
    %v126 = vmul.f32 %v123, %v125
    %v127 = vadd.f32 %v123, %v126
    %vm128 = vweird.f32 %v123
    %v129 = vsel %vm128, %v123, %v127
    %v130 = vmul.f32 %v115, %v129
    %v131 = vmul.f32 %v122, %v129
    %v132 = vld [vmem:[%s2] sm:$0xff]
    %v133 = vld [vmem:[%s2 + $0x8] sm:$0x3]
    %v134 = vld [vmem:[%s2 + $0x10] sm:$0xff]
    %v135 = vld [vmem:[%s2 + $0x18] sm:$0x3]
    %vm136 = vcmask 1041408
    %v137 = vsel %vm136, %v133, 0.0
    %v138 = vadd.f32 %v132, %v137
    %v139 = vrot.slane %v138, 4
    %v140 = vadd.f32 %v138, %v139
    %v141 = vrot.slane %v140, 2
    %v142 = vadd.f32 %v140, %v141
    %v143 = vrot.slane %v142, 1
    %v144 = vadd.f32 %v142, %v143
    %v145 = vsel %vm136, %v135, 0.0
    %v146 = vadd.f32 %v134, %v145
    %v147 = vrot.slane %v146, 4
    %v148 = vadd.f32 %v146, %v147
    %v149 = vrot.slane %v148, 2
    %v150 = vadd.f32 %v148, %v149
    %v151 = vrot.slane %v150, 1
    %v152 = vadd.f32 %v150, %v151
    %v153 = vrcp.pop 10.0
    %v154 = vmul.f32 10.0, %v153
    %v155 = vsub.f32 1.0, %v154
    %v156 = vmul.f32 %v153, %v155
    %v157 = vadd.f32 %v153, %v156
    %vm158 = vweird.f32 %v153
    %v159 = vsel %vm158, %v153, %v157
    %v160 = vmul.f32 %v144, %v159
    %v161 = vmul.f32 %v152, %v159
    %v162 = vld [vmem:[%s0] sm:$0xff]
    %v163 = vld [vmem:[%s0 + $0x8] sm:$0xff]
    %v164 = vperm.slane %v105, 0
    %vm165 = vcmask 261120
    %v167 = vsel %vm165, %v162, 0
    %v170 = vsel %vm165, %v163, 0
    %172 = vmatpush.msra.mxu0 0.0
    %173 = vmatpush.msra.mxu0 0.0
    %174 = vmatpush.msra.mxu0 0.0
    %175 = vmatpush.msra.mxu0 0.0
    %176 = vmatpush.msra.mxu0 0.0
    %177 = vmatpush.msra.mxu0 0.0
    %178 = vmatpush.msra.mxu0 0.0
    %179 = vmatpush.msra.mxu0 0.0
    %180 = vmatpush.msra.mxu0 0.0
    %181 = vmatpush.msra.mxu0 0.0
    %182 = vmatpush.msra.mxu0 0.0
    %183 = vmatpush.msra.mxu0 0.0
    %184 = vmatpush.msra.mxu0 %v40
    %185 = vmatpush.msra.mxu0 %v39
    %186 = vmatpush.msra.mxu0 %v38
    %187 = vmatpush.msra.mxu0 %v37
    %188 = vmatmul.f32.gmra.mxu0 %v167
    %v189 = vpop.f32.mrf.mxu0
    %v190 = vadd.f32 %v164, %v189
    %191 = vmatmul.f32.gmra.mxu0 %v170
    %v192 = vpop.f32.mrf.mxu0
    %v193 = vadd.f32 %v164, %v192
    %194 = vdwg.mxu0
    %v195 = vmax.f32 %v190, 0.0
    %v196 = vmax.f32 %v193, 0.0
    %v197 = vrot.slane %v195, 4
    %v198 = vmax.f32 %v195, %v197
    %v199 = vrot.slane %v198, 2
    %v200 = vmax.f32 %v198, %v199
    %v201 = vrot.slane %v200, 1
    %v202 = vmax.f32 %v200, %v201
    %v203 = vrot.slane %v196, 4
    %v204 = vmax.f32 %v196, %v203
    %v205 = vrot.slane %v204, 2
    %v206 = vmax.f32 %v204, %v205
    %v207 = vrot.slane %v206, 1
    %v208 = vmax.f32 %v206, %v207
    %v209 = vadd.f32 %v202, %v130
    %v210 = vadd.f32 %v208, %v131
    %v211 = vadd.f32 %v209, %v160
    %v212 = vadd.f32 %v210, %v161
    %v213 = vperm.slane %v105, 1
    %vm216 = vcmask 1041409
    %v217 = vsel %vm216, %v212, %v211
    %219 = vmatpush.msra.mxu0 %v56
    %220 = vmatpush.msra.mxu0 %v55
    %221 = vmatpush.msra.mxu0 %v54
    %222 = vmatpush.msra.mxu0 %v53
    %223 = vmatpush.msra.mxu0 %v52
    %224 = vmatpush.msra.mxu0 %v51
    %225 = vmatpush.msra.mxu0 %v50
    %226 = vmatpush.msra.mxu0 %v49
    %227 = vmatpush.msra.mxu0 %v48
    %228 = vmatpush.msra.mxu0 %v47
    %229 = vmatpush.msra.mxu0 %v46
    %230 = vmatpush.msra.mxu0 %v45
    %231 = vmatpush.msra.mxu0 %v44
    %232 = vmatpush.msra.mxu0 %v43
    %233 = vmatpush.msra.mxu0 %v42
    %234 = vmatpush.msra.mxu0 %v41
    %235 = vmatmul.f32.gmra.mxu0 %v217
    %v236 = vpop.f32.mrf.mxu0
    %v237 = vadd.f32 %v213, %v236
    %238 = vdwg.mxu0
    %v239 = vperm.slane %v105, 2
    %240 = vmatpush.msra.mxu0 %v72
    %241 = vmatpush.msra.mxu0 %v71
    %242 = vmatpush.msra.mxu0 %v70
    %243 = vmatpush.msra.mxu0 %v69
    %244 = vmatpush.msra.mxu0 %v68
    %245 = vmatpush.msra.mxu0 %v67
    %246 = vmatpush.msra.mxu0 %v66
    %247 = vmatpush.msra.mxu0 %v65
    %248 = vmatpush.msra.mxu0 %v64
    %249 = vmatpush.msra.mxu0 %v63
    %250 = vmatpush.msra.mxu0 %v62
    %251 = vmatpush.msra.mxu0 %v61
    %252 = vmatpush.msra.mxu0 %v60
    %253 = vmatpush.msra.mxu0 %v59
    %254 = vmatpush.msra.mxu0 %v58
    %255 = vmatpush.msra.mxu0 %v57
    %256 = vmatmul.f32.gmra.mxu0 %v237
    %v257 = vpop.f32.mrf.mxu0
    %v258 = vadd.f32 %v239, %v257
    %259 = vdwg.mxu0
    %v260 = vxor.u32 %v258, 2147483648
    %v261 = vmul.f32 %v260, 1.442695
    %v262 = vpow.pop %v261
    %v263 = vadd.f32 %v262, 1.0
    %v264 = vrcp.pop %v263
    %v265 = vmul.f32 %v263, %v264
    %v266 = vsub.f32 1.0, %v265
    %v267 = vmul.f32 %v264, %v266
    %v268 = vadd.f32 %v264, %v267
    %vm269 = vweird.f32 %v263
    %vm270 = vweird.f32 %v264
    %vm271 = vmor %vm269, %vm270
    %v272 = vsel %vm271, %v264, %v268
    %v273 = vand.u32 2147483647, %v263
    %vm274 = vcmp.eq.f32.partialorder %v273, 8.507059e+37
    %v275 = vand.u32 %v263, 2147483648
    %v276 = vor.u32 1.1754944e-38, %v275
    %v277 = vsel %vm274, %v276, %v272
    %v278 = vmul.f32 1.0, %v277
    %v279 = vmul.f32 %v237, %v278
    %v280 = vperm.slane %v105, 3
    %281 = vmatpush.msra.mxu0 %v88
    %282 = vmatpush.msra.mxu0 %v87
    %283 = vmatpush.msra.mxu0 %v86
    %284 = vmatpush.msra.mxu0 %v85
    %285 = vmatpush.msra.mxu0 %v84
    %286 = vmatpush.msra.mxu0 %v83
    %287 = vmatpush.msra.mxu0 %v82
    %288 = vmatpush.msra.mxu0 %v81
    %289 = vmatpush.msra.mxu0 %v80
    %290 = vmatpush.msra.mxu0 %v79
    %291 = vmatpush.msra.mxu0 %v78
    %292 = vmatpush.msra.mxu0 %v77
    %293 = vmatpush.msra.mxu0 %v76
    %294 = vmatpush.msra.mxu0 %v75
    %295 = vmatpush.msra.mxu0 %v74
    %296 = vmatpush.msra.mxu0 %v73
    %297 = vmatmul.f32.gmra.mxu0 %v279
    %v298 = vpop.f32.mrf.mxu0
    %v299 = vadd.f32 %v280, %v298
    %300 = vdwg.mxu0
    %v301 = vmax.f32 %v299, 0.0
    %v302 = vperm.slane %v105, 4
    %303 = vmatpush.msra.mxu0 %v104
    %304 = vmatpush.msra.mxu0 %v103
    %305 = vmatpush.msra.mxu0 %v102
    %306 = vmatpush.msra.mxu0 %v101
    %307 = vmatpush.msra.mxu0 %v100
    %308 = vmatpush.msra.mxu0 %v99
    %309 = vmatpush.msra.mxu0 %v98
    %310 = vmatpush.msra.mxu0 %v97
    %311 = vmatpush.msra.mxu0 %v96
    %312 = vmatpush.msra.mxu0 %v95
    %313 = vmatpush.msra.mxu0 %v94
    %314 = vmatpush.msra.mxu0 %v93
    %315 = vmatpush.msra.mxu0 %v92
    %316 = vmatpush.msra.mxu0 %v91
    %317 = vmatpush.msra.mxu0 %v90
    %318 = vmatpush.msra.mxu0 %v89
    %319 = vmatmul.f32.gmra.mxu0 %v301
    %v320 = vpop.f32.mrf.mxu0
    %v321 = vadd.f32 %v302, %v320
    %322 = vdwg.mxu0
    %v323 = vmax.f32 %v321, 0.0
    %v324 = vsub.f32 %v323, %v217
    %v325 = vmul.f32 %v324, %v324
    %v326 = vperm.slane %v105, 5
    %v327 = vmul.f32 %v325, %v326
    %v328 = vsel %vm136, %v327, 0.0
    %329 = vadd.xlane.f32.xlu0 %v328
    %v330 = vpop.xlane.xlu0 %329
    %331 = vst [vmem:[#allocation6] sm:$0x3] %v279
    %vm332 = vcmask 1024
    %v333 = vsel %vm332, %v330, 0.0
    %334 = vadd.xlane.f32.xlu0 %v333
    %v335 = vpop.xlane.xlu0 %334
    %v336 = vrot.slane %v335, 4
    %v337 = vadd.f32 %v335, %v336
    %v338 = vrot.slane %v337, 2
    %v339 = vadd.f32 %v337, %v338
    %v340 = vrot.slane %v339, 1
    %v341 = vadd.f32 %v339, %v340
    %s342 = vtos %v341
    %v343 = vrcp.pop 2.0
    %v344 = vmul.f32 2.0, %v343
    %v345 = vsub.f32 1.0, %v344
    %v346 = vmul.f32 %v343, %v345
    %v347 = vadd.f32 %v343, %v346
    %vm348 = vweird.f32 %v343
    %v349 = vsel %vm348, %v343, %v347
    %s350 = vtos %v349
    %s351 = smul.f32 %s342, %s350
    %s352 = scalar_lea.smem [#allocation7], 0
    %353 = sst [smem:[%s352]] %s351
    // Predicated region
    $region22: #{tpu_custom_call.1} parent=1 // pred_check
      _
    $region23: #{tpu_custom_call.1} parent=1 // pred_check_branch
      %355 = sbr.rel (0) target = $region25
    $region24: #{tpu_custom_call.1} parent=1 // pred_region
      %357 = vsyncadd [#allocation4], 0
      %s359 = sshll.u32 [#allocation6], 4
      %s360 = int_to_ptr.vmem [resolvable:$true] %s359
      %s361 = sshll.u32 %s4, 4
      %s362 = int_to_ptr.hbm [resolvable:$true] %s361
      %364 = dma.vmem_to_hbm [thread:$0]  %s360, 32, %s362, [#allocation4]
    $region25: #{tpu_custom_call.1} parent=1 // pred_fallthru
      _
    // Predicated region
    $region26: #{tpu_custom_call.1} parent=1 // pred_check
      _
    $region27: #{tpu_custom_call.1} parent=1 // pred_check_branch
      %366 = sbr.rel (0) target = $region29
    $region28: #{tpu_custom_call.1} parent=1 // pred_region
      %368 = vsyncadd [#allocation5], 0
      %s370 = sshll.u32 %s5, 4
      %s371 = int_to_ptr.hbm [resolvable:$true] %s370
      %373 = dma.smem_to_hbm [#allocation7], 16, %s371, [#allocation5]
    $region29: #{tpu_custom_call.1} parent=1 // pred_fallthru
      _
    // Predicated region
    $region30: #{tpu_custom_call.1} parent=1 // pred_check
      _
    $region31: #{tpu_custom_call.1} parent=1 // pred_check_branch
      %375 = sbr.rel (0) target = $region33
    $region32: #{tpu_custom_call.1} parent=1 // pred_region
      %377 = dma.done [#allocation4], 32
    $region33: #{tpu_custom_call.1} parent=1 // pred_fallthru
      _
    // Predicated region
    $region34: #{tpu_custom_call.1} parent=1 // pred_check
      _
    $region35: #{tpu_custom_call.1} parent=1 // pred_check_branch
      %379 = sbr.rel (0) target = $region37
    $region36: #{tpu_custom_call.1} parent=1 // pred_region
      %381 = dma.done [#allocation5], 16
    $region37: #{tpu_custom_call.1} parent=1 // pred_fallthru
      _
    %382 = sfence
    %383 = vsyncpa [#allocation3], 1
    %384 = vsyncpa [#allocation4], 1
    %385 = vsyncpa [#allocation5], 1

</llo_original>
